<compile_context>
chip_gen: v5e
topology: v5e:2x2
jax: 0.10.0
libtpu: 0.0.40
codegen_flags: <defaults>
</compile_context>

<pallas_src>
import jax
import jax.numpy as jnp
from jax.experimental import pallas as pl
from jax.experimental.pallas import tpu as pltpu

_LANE = 128
_SUBLANE = 8
_NEG_LARGE = -1e30  # stands in for -inf on padded class logits


def _round_up(x, m):
    return ((x + m - 1) // m) * m


def ctc_head_kernel(x_ref, w_enc_ref, b_enc_ref, w_out_ref, b_out_ref, o_ref):
    """Fused encoder-projection + classifier + log_softmax for one row tile.

    x_ref:     (TILE_N, D_in)   f32 flattened features (one row tile)
    w_enc_ref: (D_in, H_pad)    bf16 synthetic-encoder Linear weight (in, out)
    b_enc_ref: (1, H_pad)       f32 encoder bias (zeros in padded lanes)
    w_out_ref: (H_pad, C_pad)   bf16 CTC output Linear weight (in, out)
    b_out_ref: (1, C_pad)       f32 output bias (-1e30 in padded class lanes)
    o_ref:     (TILE_N, C_pad)  log-probabilities
    """
    # Cast to bf16 in-kernel (VPU work hidden under the MXU) instead of an
    # extra XLA pad+cast pass over x in HBM.
    x = x_ref[...].astype(jnp.bfloat16)

    # Synthetic encoder: Linear + ReLU (bf16 MXU matmul, f32 accumulate / VPU).
    h = jnp.dot(x, w_enc_ref[...], preferred_element_type=jnp.float32)
    h = jnp.maximum(h + b_enc_ref[...], 0.0)

    # self.out: Linear(encoder.output_dim, n_class), bf16 operands, f32 acc.
    logits = jnp.dot(h.astype(w_out_ref.dtype), w_out_ref[...],
                     preferred_element_type=jnp.float32)
    logits = logits + b_out_ref[...]  # padded classes land at ~-1e30

    # F.log_softmax(logits, -1), numerically stable, all in f32
    # (v5e has no bf16 VPU/EUP, so keep elementwise math f32 everywhere).
    m = jnp.max(logits, axis=-1, keepdims=True)
    shifted = logits - m
    lse = jnp.log(jnp.sum(jnp.exp(shifted), axis=-1, keepdims=True))
    o_ref[...] = (shifted - lse).astype(o_ref.dtype)


def _default_vmem_limit():
    """~3/4 of physical VMEM: 96 MiB on v5e/v6e (128 MiB), 48 MiB on v7x (64 MiB)."""
    try:
        cap = pltpu.get_tpu_info().vmem_capacity_bytes
    except Exception:
        cap = 64 << 20  # conservative fallback (v7x per-TC size)
    return min(int(cap) * 3 // 4, 100 << 20)


def _resident_spec_single(shape):
    # Constant index_map -> block never changes; single-buffer it so the
    # resident weights/biases only occupy their footprint once (matters on
    # v7x's 64 MiB VMEM).
    return pl.BlockSpec(shape, lambda i: (0,) * len(shape),
                        pipeline_mode=pl.Buffered(1))


def _resident_spec_double(shape):
    return pl.BlockSpec(shape, lambda i: (0,) * len(shape))


def init_params(key, d_in, hidden, n_class):
    """Deterministic PyTorch-Linear-style init (uniform +/- 1/sqrt(fan_in))."""
    k1, k2, k3, k4 = jax.random.split(key, 4)
    s_enc = 1.0 / jnp.sqrt(jnp.float32(d_in))
    s_out = 1.0 / jnp.sqrt(jnp.float32(hidden))
    return {
        "w_enc": jax.random.uniform(k1, (d_in, hidden), jnp.float32, -s_enc, s_enc),
        "b_enc": jax.random.uniform(k2, (1, hidden), jnp.float32, -s_enc, s_enc),
        "w_out": jax.random.uniform(k3, (hidden, n_class), jnp.float32, -s_out, s_out),
        "b_out": jax.random.uniform(k4, (1, n_class), jnp.float32, -s_out, s_out),
    }


def prepare_params(params):
    """Pad out-feature dims to full 128-lane width and bf16-cast weights ONCE.

    Called once at parameter-prep time (not per forward) so padded bf16 copies
    are not re-materialized in HBM on every step.
    """
    d_in, hidden = params["w_enc"].shape
    n_class = params["w_out"].shape[1]
    h_pad = _round_up(hidden, _LANE)
    c_pad = _round_up(n_class, _LANE)
    return {
        "d_in": d_in,
        "hidden": hidden,
        "n_class": n_class,
        "w_enc": jnp.pad(params["w_enc"],
                         ((0, 0), (0, h_pad - hidden))).astype(jnp.bfloat16),
        "b_enc": jnp.pad(params["b_enc"], ((0, 0), (0, h_pad - hidden))),
        "w_out": jnp.pad(params["w_out"],
                         ((0, h_pad - hidden), (0, c_pad - n_class))).astype(jnp.bfloat16),
        # Padded classes get a huge negative bias -> excluded from the softmax.
        "b_out": jnp.pad(params["b_out"], ((0, 0), (0, c_pad - n_class)),
                         constant_values=_NEG_LARGE),
    }


def _run_head(x_flat, prepped, tile_n, num_tiles, out_dtype, cost,
              resident_spec_fn):
    N, D_in = x_flat.shape
    H_pad = prepped["w_enc"].shape[1]
    C_pad = prepped["w_out"].shape[1]
    return pl.pallas_call(
        ctc_head_kernel,
        out_shape=jax.ShapeDtypeStruct((N, C_pad), out_dtype),
        grid=(num_tiles,),
        in_specs=[
            # Streamed row tile; last dim equals the full (unpadded) D_in.
            pl.BlockSpec((tile_n, D_in), lambda i: (i, 0)),
            resident_spec_fn((D_in, H_pad)),     # VMEM-resident weights/biases
            resident_spec_fn((1, H_pad)),
            resident_spec_fn((H_pad, C_pad)),
            resident_spec_fn((1, C_pad)),
        ],
        out_specs=pl.BlockSpec((tile_n, C_pad), lambda i: (i, 0)),
        compiler_params=pltpu.CompilerParams(
            dimension_semantics=("parallel",),   # rows independent -> megacore
            vmem_limit_bytes=_default_vmem_limit(),
        ),
        cost_estimate=cost,
    )(x_flat, prepped["w_enc"], prepped["b_enc"], prepped["w_out"],
      prepped["b_out"])


def ctc_model_forward(inputs, input_lengths, prepped, *, tile_n=512,
                      out_dtype=jnp.float32):
    """JAX wrapper reproducing CTCModel.forward.

    inputs:        (B, T, D_in) float32
    input_lengths: (B,) int32
    prepped:       output of prepare_params (padded + bf16 weights)
    tile_n:        rows per block; tune per generation (v5e 1024-2048,
                   v6e 512-1024, v7x sized against its 48 MiB budget).
    out_dtype:     jnp.float32 (default) or jnp.bfloat16 if the downstream
                   CTC loss tolerates bf16 log-probs (halves output HBM traffic).
    returns: (log_probs (B, T, C), output_lengths (B,))
    """
    B, T, D_in = inputs.shape
    assert D_in == prepped["d_in"]
    C = prepped["n_class"]
    H_pad = prepped["w_enc"].shape[1]
    C_pad = prepped["w_out"].shape[1]
    N = B * T

    # Row tile: multiple of 8 sublanes. Keep >= 2 tiles when N allows so both
    # v7x TensorCores get work; Pallas handles the trailing partial block.
    tile_n = max(_SUBLANE,
                 (min(tile_n, _round_up(N, _SUBLANE)) // _SUBLANE) * _SUBLANE)
    if N > _SUBLANE and pl.cdiv(N, tile_n) < 2:
        tile_n = max(_SUBLANE, _round_up(pl.cdiv(N, 2), _SUBLANE))
    num_tiles = pl.cdiv(N, tile_n)

    # Unpadded f32 slab straight into the kernel -- no extra pad/cast HBM pass.
    x_flat = inputs.reshape(N, D_in)

    cost = pl.CostEstimate(
        flops=2 * N * (D_in * H_pad + H_pad * C_pad),
        transcendentals=N * (C_pad + 1),
        bytes_accessed=(N * D_in * 4                              # x (f32) in
                        + N * C_pad * jnp.dtype(out_dtype).itemsize  # out
                        + (D_in * H_pad + H_pad * C_pad) * 2      # bf16 weights
                        + (H_pad + C_pad) * 4),                   # f32 biases
    )

    # TODO(synk): for very large vocabularies (H_pad*C_pad*2B or the
    # (tile_n, C_pad) logits tile exceeding the VMEM budget, esp. v7x 64 MiB),
    # add a second "arbitrary" grid axis over C-chunks with an online
    # max/logsumexp accumulator in VMEM scratch.
    try:
        out = _run_head(x_flat, prepped, tile_n, num_tiles, out_dtype, cost,
                        _resident_spec_single)
    except Exception:
        # Older Pallas without BlockSpec pipeline_mode / Buffered(1):
        # fall back to default double-buffered resident weights.
        out = _run_head(x_flat, prepped, tile_n, num_tiles, out_dtype, cost,
                        _resident_spec_double)

    # Only the class axis may need slicing, and only when C is not already a
    # multiple of 128 (padded classes are ~ -inf, so a fused downstream CTC
    # loss could consume the lane-padded (N, C_pad) slab directly).
    log_probs = out if C_pad == C else out[:, :C]
    log_probs = log_probs.reshape(B, T, C)

    # Synthetic encoder is length-preserving; real LAS listeners may downsample.
    # TODO(synk): pyramidal-BiLSTM time downsampling of output_lengths not modeled.
    output_lengths = input_lengths
    return log_probs, output_lengths


if __name__ == "__main__":
    B, T, D_in, H, C = 2, 8, 16, 32, 16

    key = jax.random.PRNGKey(0)
    k_x, k_p = jax.random.split(key)

    inputs = jax.random.normal(k_x, (B, T, D_in), jnp.float32)
    input_lengths = jnp.array([T, T - 2], dtype=jnp.int32)
    params = init_params(k_p, D_in, H, C)
    prepped = prepare_params(params)  # pad + bf16-cast weights ONCE

    log_probs, output_lengths = ctc_model_forward(inputs, input_lengths, prepped)
    jax.block_until_ready(log_probs)
    jax.block_until_ready(output_lengths)

    # Reference in plain JAX (f32 end-to-end). The kernel uses bf16 MXU
    # operands with f32 accumulation, so the tolerance is bf16-level.
    h_ref = jnp.maximum(
        inputs.reshape(B * T, D_in) @ params["w_enc"] + params["b_enc"], 0.0)
    logits_ref = h_ref @ params["w_out"] + params["b_out"]
    ref = jax.nn.log_softmax(logits_ref, axis=-1).reshape(B, T, C)
    assert log_probs.shape == (B, T, C)
    assert jnp.allclose(log_probs, ref, atol=3e-2, rtol=3e-2), "mismatch vs reference"
    # log_softmax rows must sum (in prob space) to 1 (f32 softmax math in-kernel).
    assert jnp.allclose(jnp.sum(jnp.exp(log_probs), axis=-1), 1.0, atol=1e-4)
    assert jnp.all(output_lengths == input_lengths)

    print("KERNEL_OK")
</pallas_src>

<mosaic_0001>
module attributes {stable_mosaic.version = 11 : i64} {
  func.func @ctc_head_kernel(%arg0: i32, %arg1: memref<8x16xf32, #tpu.memory_space<vmem>>, %arg2: memref<16x128xbf16, #tpu.memory_space<vmem>>, %arg3: memref<1x128xf32, #tpu.memory_space<vmem>>, %arg4: memref<128x128xbf16, #tpu.memory_space<vmem>>, %arg5: memref<1x128xf32, #tpu.memory_space<vmem>>, %arg6: memref<8x128xf32, #tpu.memory_space<vmem>>) attributes {dimension_semantics = [#tpu.dimension_semantics<parallel>], iteration_bounds = array<i64: 2>, scalar_prefetch = 0 : i64, scratch_operands = 0 : i64, tpu.core_type = #tpu.core_type<tc>, window_params = [{transform_indices = @transform_0, window_bounds = array<i64: 8, 16>}, {pipeline_mode = #tpu.pipeline_mode<synchronous>, transform_indices = @transform_1, window_bounds = array<i64: 16, 128>}, {pipeline_mode = #tpu.pipeline_mode<synchronous>, transform_indices = @transform_2, window_bounds = array<i64: 1, 128>}, {pipeline_mode = #tpu.pipeline_mode<synchronous>, transform_indices = @transform_3, window_bounds = array<i64: 128, 128>}, {pipeline_mode = #tpu.pipeline_mode<synchronous>, transform_indices = @transform_4, window_bounds = array<i64: 1, 128>}, {transform_indices = @transform_5, window_bounds = array<i64: 8, 128>}]} {
    %c0 = arith.constant 0 : index
    %c0_0 = arith.constant 0 : index
    %0 = vector.load %arg1[%c0, %c0_0] : memref<8x16xf32, #tpu.memory_space<vmem>>, vector<8x16xf32>
    %1 = arith.truncf %0 : vector<8x16xf32> to vector<8x16xbf16>
    %c0_1 = arith.constant 0 : index
    %c0_2 = arith.constant 0 : index
    %2 = vector.load %arg2[%c0_1, %c0_2] : memref<16x128xbf16, #tpu.memory_space<vmem>>, vector<16x128xbf16>
    %cst = arith.constant dense<0.000000e+00> : vector<8x128xf32>
    %3 = tpu.matmul %1, %2, %cst {dimension_numbers = #tpu.dot_dimension_numbers<[1], [0], [0], [1], [0, 0, 1, 1], [], []>} : vector<8x16xbf16>, vector<16x128xbf16>, vector<8x128xf32> -> vector<8x128xf32>
    %c0_3 = arith.constant 0 : index
    %c0_4 = arith.constant 0 : index
    %4 = vector.load %arg3[%c0_3, %c0_4] : memref<1x128xf32, #tpu.memory_space<vmem>>, vector<1x128xf32>
    %5 = vector.broadcast %4 : vector<1x128xf32> to vector<8x128xf32>
    %6 = arith.addf %3, %5 : vector<8x128xf32>
    %cst_5 = arith.constant 0.000000e+00 : f32
    %7 = vector.broadcast %cst_5 : f32 to vector<8x128xf32>
    %8 = arith.maximumf %6, %7 : vector<8x128xf32>
    %9 = arith.truncf %8 : vector<8x128xf32> to vector<8x128xbf16>
    %c0_6 = arith.constant 0 : index
    %c0_7 = arith.constant 0 : index
    %10 = vector.load %arg4[%c0_6, %c0_7] : memref<128x128xbf16, #tpu.memory_space<vmem>>, vector<128x128xbf16>
    %cst_8 = arith.constant dense<0.000000e+00> : vector<8x128xf32>
    %11 = tpu.matmul %9, %10, %cst_8 {dimension_numbers = #tpu.dot_dimension_numbers<[1], [0], [0], [1], [0, 0, 1, 1], [], []>} : vector<8x128xbf16>, vector<128x128xbf16>, vector<8x128xf32> -> vector<8x128xf32>
    %c0_9 = arith.constant 0 : index
    %c0_10 = arith.constant 0 : index
    %12 = vector.load %arg5[%c0_9, %c0_10] : memref<1x128xf32, #tpu.memory_space<vmem>>, vector<1x128xf32>
    %13 = vector.broadcast %12 : vector<1x128xf32> to vector<8x128xf32>
    %14 = arith.addf %11, %13 : vector<8x128xf32>
    %cst_11 = arith.constant dense<0xFF800000> : vector<8xf32>
    %15 = vector.multi_reduction <maximumf>, %14, %cst_11 [1] : vector<8x128xf32> to vector<8xf32>
    %16 = vector.shape_cast %15 : vector<8xf32> to vector<8x1xf32>
    %17 = vector.broadcast %16 : vector<8x1xf32> to vector<8x128xf32>
    %18 = arith.subf %14, %17 : vector<8x128xf32>
    %19 = math.exp %18 : vector<8x128xf32>
    %cst_12 = arith.constant dense<0.000000e+00> : vector<8xf32>
    %20 = vector.multi_reduction <add>, %19, %cst_12 [1] : vector<8x128xf32> to vector<8xf32>
    %21 = vector.shape_cast %20 : vector<8xf32> to vector<8x1xf32>
    %22 = math.log %21 : vector<8x1xf32>
    %23 = vector.broadcast %22 : vector<8x1xf32> to vector<8x128xf32>
    %24 = arith.subf %18, %23 : vector<8x128xf32>
    %c0_13 = arith.constant 0 : index
    %c0_14 = arith.constant 0 : index
    %25 = vector.load %arg6[%c0_13, %c0_14] : memref<8x128xf32, #tpu.memory_space<vmem>>, vector<8x128xf32>
    tpu.vector_store %arg6[%c0_13, %c0_14], %24 {strides = array<i32>} : memref<8x128xf32, #tpu.memory_space<vmem>>, vector<8x128xf32>,
    return
  }
  func.func @transform_0(%arg0: i32) -> (i32, i32) {
    %c0_i32 = arith.constant 0 : i32
    %c0_i32_0 = arith.constant 0 : i32
    return %arg0, %c0_i32 : i32, i32
  }
  func.func @transform_1(%arg0: i32) -> (i32, i32) {
    %c0_i32 = arith.constant 0 : i32
    %c0_i32_0 = arith.constant 0 : i32
    %c0_i32_1 = arith.constant 0 : i32
    return %c0_i32, %c0_i32_0 : i32, i32
  }
  func.func @transform_2(%arg0: i32) -> (i32, i32) {
    %c0_i32 = arith.constant 0 : i32
    %c0_i32_0 = arith.constant 0 : i32
    %c0_i32_1 = arith.constant 0 : i32
    return %c0_i32, %c0_i32_0 : i32, i32
  }
  func.func @transform_3(%arg0: i32) -> (i32, i32) {
    %c0_i32 = arith.constant 0 : i32
    %c0_i32_0 = arith.constant 0 : i32
    %c0_i32_1 = arith.constant 0 : i32
    return %c0_i32, %c0_i32_0 : i32, i32
  }
  func.func @transform_4(%arg0: i32) -> (i32, i32) {
    %c0_i32 = arith.constant 0 : i32
    %c0_i32_0 = arith.constant 0 : i32
    %c0_i32_1 = arith.constant 0 : i32
    return %c0_i32, %c0_i32_0 : i32, i32
  }
  func.func @transform_5(%arg0: i32) -> (i32, i32) {
    %c0_i32 = arith.constant 0 : i32
    %c0_i32_0 = arith.constant 0 : i32
    return %arg0, %c0_i32 : i32, i32
  }
}

module attributes {stable_mosaic.version = 11 : i64} {
  func.func @ctc_head_kernel(%arg0: i32, %arg1: memref<8x16xf32, #tpu.memory_space<vmem>>, %arg2: memref<16x128xbf16, #tpu.memory_space<vmem>>, %arg3: memref<1x128xf32, #tpu.memory_space<vmem>>, %arg4: memref<128x128xbf16, #tpu.memory_space<vmem>>, %arg5: memref<1x128xf32, #tpu.memory_space<vmem>>, %arg6: memref<8x128xf32, #tpu.memory_space<vmem>>) attributes {dimension_semantics = [#tpu.dimension_semantics<parallel>], iteration_bounds = array<i64: 2>, scalar_prefetch = 0 : i64, scratch_operands = 0 : i64, tpu.core_type = #tpu.core_type<tc>, window_params = [{transform_indices = @transform_0, window_bounds = array<i64: 8, 16>}, {pipeline_mode = #tpu.pipeline_mode<synchronous>, transform_indices = @transform_1, window_bounds = array<i64: 16, 128>}, {pipeline_mode = #tpu.pipeline_mode<synchronous>, transform_indices = @transform_2, window_bounds = array<i64: 1, 128>}, {pipeline_mode = #tpu.pipeline_mode<synchronous>, transform_indices = @transform_3, window_bounds = array<i64: 128, 128>}, {pipeline_mode = #tpu.pipeline_mode<synchronous>, transform_indices = @transform_4, window_bounds = array<i64: 1, 128>}, {transform_indices = @transform_5, window_bounds = array<i64: 8, 128>}]} {
    %c0 = arith.constant 0 : index
    %c0_0 = arith.constant 0 : index
    %0 = vector.load %arg1[%c0, %c0_0] : memref<8x16xf32, #tpu.memory_space<vmem>>, vector<8x16xf32>
    %1 = arith.truncf %0 : vector<8x16xf32> to vector<8x16xbf16>
    %c0_1 = arith.constant 0 : index
    %c0_2 = arith.constant 0 : index
    %2 = vector.load %arg2[%c0_1, %c0_2] : memref<16x128xbf16, #tpu.memory_space<vmem>>, vector<16x128xbf16>
    %cst = arith.constant dense<0.000000e+00> : vector<8x128xf32>
    %3 = tpu.matmul %1, %2, %cst {dimension_numbers = #tpu.dot_dimension_numbers<[1], [0], [0], [1], [0, 0, 1, 1], [], []>} : vector<8x16xbf16>, vector<16x128xbf16>, vector<8x128xf32> -> vector<8x128xf32>
    %c0_3 = arith.constant 0 : index
    %c0_4 = arith.constant 0 : index
    %4 = vector.load %arg3[%c0_3, %c0_4] : memref<1x128xf32, #tpu.memory_space<vmem>>, vector<1x128xf32>
    %5 = vector.broadcast %4 : vector<1x128xf32> to vector<8x128xf32>
    %6 = arith.addf %3, %5 : vector<8x128xf32>
    %cst_5 = arith.constant 0.000000e+00 : f32
    %7 = vector.broadcast %cst_5 : f32 to vector<8x128xf32>
    %8 = arith.maximumf %6, %7 : vector<8x128xf32>
    %9 = arith.truncf %8 : vector<8x128xf32> to vector<8x128xbf16>
    %c0_6 = arith.constant 0 : index
    %c0_7 = arith.constant 0 : index
    %10 = vector.load %arg4[%c0_6, %c0_7] : memref<128x128xbf16, #tpu.memory_space<vmem>>, vector<128x128xbf16>
    %cst_8 = arith.constant dense<0.000000e+00> : vector<8x128xf32>
    %11 = tpu.matmul %9, %10, %cst_8 {dimension_numbers = #tpu.dot_dimension_numbers<[1], [0], [0], [1], [0, 0, 1, 1], [], []>} : vector<8x128xbf16>, vector<128x128xbf16>, vector<8x128xf32> -> vector<8x128xf32>
    %c0_9 = arith.constant 0 : index
    %c0_10 = arith.constant 0 : index
    %12 = vector.load %arg5[%c0_9, %c0_10] : memref<1x128xf32, #tpu.memory_space<vmem>>, vector<1x128xf32>
    %13 = vector.broadcast %12 : vector<1x128xf32> to vector<8x128xf32>
    %14 = arith.addf %11, %13 : vector<8x128xf32>
    %cst_11 = arith.constant dense<0xFF800000> : vector<8xf32>
    %15 = vector.multi_reduction <maximumf>, %14, %cst_11 [1] : vector<8x128xf32> to vector<8xf32>
    %16 = vector.shape_cast %15 : vector<8xf32> to vector<8x1xf32>
    %17 = vector.broadcast %16 : vector<8x1xf32> to vector<8x128xf32>
    %18 = arith.subf %14, %17 : vector<8x128xf32>
    %19 = math.exp %18 : vector<8x128xf32>
    %cst_12 = arith.constant dense<0.000000e+00> : vector<8xf32>
    %20 = vector.multi_reduction <add>, %19, %cst_12 [1] : vector<8x128xf32> to vector<8xf32>
    %21 = vector.shape_cast %20 : vector<8xf32> to vector<8x1xf32>
    %22 = math.log %21 : vector<8x1xf32>
    %23 = vector.broadcast %22 : vector<8x1xf32> to vector<8x128xf32>
    %24 = arith.subf %18, %23 : vector<8x128xf32>
    %c0_13 = arith.constant 0 : index
    %c0_14 = arith.constant 0 : index
    %25 = vector.load %arg6[%c0_13, %c0_14] : memref<8x128xf32, #tpu.memory_space<vmem>>, vector<8x128xf32>
    tpu.vector_store %arg6[%c0_13, %c0_14], %24 {strides = array<i32>} : memref<8x128xf32, #tpu.memory_space<vmem>>, vector<8x128xf32>,
    return
  }
  func.func @transform_0(%arg0: i32) -> (i32, i32) {
    %c0_i32 = arith.constant 0 : i32
    %c0_i32_0 = arith.constant 0 : i32
    return %arg0, %c0_i32 : i32, i32
  }
  func.func @transform_1(%arg0: i32) -> (i32, i32) {
    %c0_i32 = arith.constant 0 : i32
    %c0_i32_0 = arith.constant 0 : i32
    %c0_i32_1 = arith.constant 0 : i32
    return %c0_i32, %c0_i32_0 : i32, i32
  }
  func.func @transform_2(%arg0: i32) -> (i32, i32) {
    %c0_i32 = arith.constant 0 : i32
    %c0_i32_0 = arith.constant 0 : i32
    %c0_i32_1 = arith.constant 0 : i32
    return %c0_i32, %c0_i32_0 : i32, i32
  }
  func.func @transform_3(%arg0: i32) -> (i32, i32) {
    %c0_i32 = arith.constant 0 : i32
    %c0_i32_0 = arith.constant 0 : i32
    %c0_i32_1 = arith.constant 0 : i32
    return %c0_i32, %c0_i32_0 : i32, i32
  }
  func.func @transform_4(%arg0: i32) -> (i32, i32) {
    %c0_i32 = arith.constant 0 : i32
    %c0_i32_0 = arith.constant 0 : i32
    %c0_i32_1 = arith.constant 0 : i32
    return %c0_i32, %c0_i32_0 : i32, i32
  }
  func.func @transform_5(%arg0: i32) -> (i32, i32) {
    %c0_i32 = arith.constant 0 : i32
    %c0_i32_0 = arith.constant 0 : i32
    return %arg0, %c0_i32 : i32, i32
  }
}

</mosaic_0001>

<llo_original>
// kernel: tpu_custom_call.1
$region0: #{tpu_custom_call.1}
  #allocation0 [shape = 'u32[]', space=smem, size = 0x4, offset = 0x4, fixed_abs, tag = 'smem constant byte address 0x4 - core index']
  #allocation1 [shape = 'u32[72,128]{1,0:T(1,128)}', space=vmem, size = 0x9000, scoped, tag = 'internal scratch']
  %s0 = inlined_call_operand.hbm [shape: f32[16,16], index: 0, kind: input, shape index: {}]
  %s1 = inlined_call_operand.hbm [shape: bf16[16,128], index: 1, kind: input, shape index: {}]
  %s2 = inlined_call_operand.vmem [shape: f32[1,128], index: 2, kind: input, shape index: {}]
  %s3 = inlined_call_operand.hbm [shape: bf16[128,128], index: 3, kind: input, shape index: {}]
  %s4 = inlined_call_operand.vmem [shape: f32[1,128], index: 4, kind: input, shape index: {}]
  %s5 = inlined_call_operand.hbm [shape: f32[16,128], index: 5, kind: output, shape index: {}]
  %s6 = sld [smem:[#allocation0]]
  $region65: #{tpu_custom_call.1} parent=0
    _
  %s8 = ssub.s32 1, %s6
  %s9 = scalar_select 0, %s8, %s6
  $region1: #{tpu_custom_call.1} parent=0
    #allocation2 [shape = 'u8[8192]{0}', space=vmem, size = 0x2000, scoped, tag = 'input window, operand 0']
    #allocation3 [shape = 's32[2]{0}', space=sflag, size = 0x8, scoped, tag = 'scoped memory for tpu_custom_call.1']
    #allocation4 [shape = 's32[2]{0}', space=sflag, size = 0x8, scoped, tag = 'scoped memory for tpu_custom_call.1']
    #allocation5 [shape = 'u8[4096]{0}', space=vmem, size = 0x1000, scoped, tag = 'input window, operand 1, single buffered']
    #allocation6 [shape = 's32[1]{0}', space=sflag, size = 0x4, scoped, tag = 'scoped memory for tpu_custom_call.1']
    #allocation7 [shape = 'u8[32768]{0}', space=vmem, size = 0x8000, scoped, tag = 'input window, operand 3, single buffered']
    #allocation8 [shape = 'u8[8192]{0}', space=vmem, size = 0x2000, scoped, tag = 'output window, operand 0']
    %10 = vsyncpa [#allocation3], 0
    %s11 = scalar_lea.sflag [#allocation3], 1
    %12 = vsyncpa %s11, 0
    %13 = vsyncpa [#allocation6], 0
    %14 = vsyncpa [#allocation4], 0
    %s15 = scalar_lea.sflag [#allocation4], 1
    %16 = vsyncpa %s15, 0
    loop: start=0, step=1, limit=4
    $region2: #{tpu_custom_call.1} parent=1 // loop_pre_header
      _
    $region3: #{tpu_custom_call.1} parent=1 // loop_header
      %s18 = sphi 0, %s22
      %p19 = scmp.ge.s32.totalorder %s18, 4
      %s28 = sphi 0, %s30
      %s31 = sphi 0, %s28
      %s32 = sphi 0, %s31
      %s48 = sphi 0, %s32
      %s52 = sphi 0, %s52
      %s54 = sphi 0, %s52
      %s55 = sphi 0, %s54
      %s69 = sphi 0, %s55
      %s73 = sphi 0, %s73
      %s75 = sphi 0, %s73
      %s76 = sphi 0, %s75
      %s90 = sphi 0, %s76
      %s94 = sphi 0, %s94
      %s96 = sphi 0, %s94
      %s97 = sphi 0, %s96
      %s111 = sphi 0, %s97
      %s115 = sphi 0, %s115
      %s117 = sphi 0, %s115
      %s118 = sphi 0, %s117
      %s132 = sphi 0, %s118
      %s138 = sphi 0, %s140
      %s141 = sphi 0, %s138
      %s142 = sphi 0, %s141
      %s158 = sphi 0, %s142
    $region4: #{tpu_custom_call.1} parent=1 // loop_header_branch
      %21 = sbr.rel (%p19) target = $region8
    $region5: #{tpu_custom_call.1} parent=1 // loop_body
      %s23 = ssub.s32 %s18, 1
      %s24 = ssub.s32 %s18, 2
      %s25 = sadd.s32 %s18, 1
      %s26 = ssub.s32 %s18, %s25
      %p27 = scmp.eq.s32.totalorder %s26, 0
      %s29 = sadd.s32 %s28, 1
      %s30 = scalar_select %p27, %s28, %s29
      %p33 = pneg %p27
      %p34 = scmp.eq.s32.totalorder %s18, 1
      %p35 = por %p33, %p34
      %p36 = scmp.ne.s32.totalorder %s28, %s31
      %p37 = scmp.eq.s32.totalorder %s18, 0
      %p38 = por %p36, %p37
      %p39 = scmp.ne.s32.totalorder %s28, %s31
      %p40 = scmp.eq.s32.totalorder %s23, 1
      %p41 = por %p39, %p40
      %p42 = scmp.ne.s32.totalorder %s31, %s32
      %p43 = scmp.eq.s32.totalorder %s23, 0
      %p44 = por %p42, %p43
      %p45 = scmp.ne.s32.totalorder %s31, %s32
      %p46 = scmp.eq.s32.totalorder %s24, 1
      %p47 = por %p45, %p46
      %p49 = scmp.ne.s32.totalorder %s32, %s48
      %p50 = scmp.eq.s32.totalorder %s24, 0
      %p51 = por %p49, %p50
      %s53 = sadd.s32 %s52, 1
      %p56 = scmp.eq.s32.totalorder %s18, 1
      %p57 = scmp.ne.s32.totalorder %s52, %s54
      %p58 = scmp.eq.s32.totalorder %s18, 0
      %p59 = por %p57, %p58
      %p60 = scmp.ne.s32.totalorder %s52, %s54
      %p61 = scmp.eq.s32.totalorder %s23, 1
      %p62 = por %p60, %p61
      %p63 = scmp.ne.s32.totalorder %s54, %s55
      %p64 = scmp.eq.s32.totalorder %s23, 0
      %p65 = por %p63, %p64
      %p66 = scmp.ne.s32.totalorder %s54, %s55
      %p67 = scmp.eq.s32.totalorder %s24, 1
      %p68 = por %p66, %p67
      %p70 = scmp.ne.s32.totalorder %s55, %s69
      %p71 = scmp.eq.s32.totalorder %s24, 0
      %p72 = por %p70, %p71
      %s74 = sadd.s32 %s73, 1
      %p77 = scmp.eq.s32.totalorder %s18, 1
      %p78 = scmp.ne.s32.totalorder %s73, %s75
      %p79 = scmp.eq.s32.totalorder %s18, 0
      %p80 = por %p78, %p79
      %p81 = scmp.ne.s32.totalorder %s73, %s75
      %p82 = scmp.eq.s32.totalorder %s23, 1
      %p83 = por %p81, %p82
      %p84 = scmp.ne.s32.totalorder %s75, %s76
      %p85 = scmp.eq.s32.totalorder %s23, 0
      %p86 = por %p84, %p85
      %p87 = scmp.ne.s32.totalorder %s75, %s76
      %p88 = scmp.eq.s32.totalorder %s24, 1
      %p89 = por %p87, %p88
      %p91 = scmp.ne.s32.totalorder %s76, %s90
      %p92 = scmp.eq.s32.totalorder %s24, 0
      %p93 = por %p91, %p92
      %s95 = sadd.s32 %s94, 1
      %p98 = scmp.eq.s32.totalorder %s18, 1
      %p99 = scmp.ne.s32.totalorder %s94, %s96
      %p100 = scmp.eq.s32.totalorder %s18, 0
      %p101 = por %p99, %p100
      %p102 = scmp.ne.s32.totalorder %s94, %s96
      %p103 = scmp.eq.s32.totalorder %s23, 1
      %p104 = por %p102, %p103
      %p105 = scmp.ne.s32.totalorder %s96, %s97
      %p106 = scmp.eq.s32.totalorder %s23, 0
      %p107 = por %p105, %p106
      %p108 = scmp.ne.s32.totalorder %s96, %s97
      %p109 = scmp.eq.s32.totalorder %s24, 1
      %p110 = por %p108, %p109
      %p112 = scmp.ne.s32.totalorder %s97, %s111
      %p113 = scmp.eq.s32.totalorder %s24, 0
      %p114 = por %p112, %p113
      %s116 = sadd.s32 %s115, 1
      %p119 = scmp.eq.s32.totalorder %s18, 1
      %p120 = scmp.ne.s32.totalorder %s115, %s117
      %p121 = scmp.eq.s32.totalorder %s18, 0
      %p122 = por %p120, %p121
      %p123 = scmp.ne.s32.totalorder %s115, %s117
      %p124 = scmp.eq.s32.totalorder %s23, 1
      %p125 = por %p123, %p124
      %p126 = scmp.ne.s32.totalorder %s117, %s118
      %p127 = scmp.eq.s32.totalorder %s23, 0
      %p128 = por %p126, %p127
      %p129 = scmp.ne.s32.totalorder %s117, %s118
      %p130 = scmp.eq.s32.totalorder %s24, 1
      %p131 = por %p129, %p130
      %p133 = scmp.ne.s32.totalorder %s118, %s132
      %p134 = scmp.eq.s32.totalorder %s24, 0
      %p135 = por %p133, %p134
      %s136 = ssub.s32 %s18, %s25
      %p137 = scmp.eq.s32.totalorder %s136, 0
      %s139 = sadd.s32 %s138, 1
      %s140 = scalar_select %p137, %s138, %s139
      %p143 = pneg %p137
      %p144 = scmp.eq.s32.totalorder %s18, 1
      %p145 = por %p143, %p144
      %p146 = scmp.ne.s32.totalorder %s138, %s141
      %p147 = scmp.eq.s32.totalorder %s18, 0
      %p148 = por %p146, %p147
      %p149 = scmp.ne.s32.totalorder %s138, %s141
      %p150 = scmp.eq.s32.totalorder %s23, 1
      %p151 = por %p149, %p150
      %p152 = scmp.ne.s32.totalorder %s141, %s142
      %p153 = scmp.eq.s32.totalorder %s23, 0
      %p154 = por %p152, %p153
      %p155 = scmp.ne.s32.totalorder %s141, %s142
      %p156 = scmp.eq.s32.totalorder %s24, 1
      %p157 = por %p155, %p156
      %p159 = scmp.ne.s32.totalorder %s142, %s158
      %p160 = scmp.eq.s32.totalorder %s24, 0
      %p161 = por %p159, %p160
      %p162 = scmp.le.s32.totalorder 1, %s18
      %p163 = scmp.lt.s32.totalorder %s18, 3
      %p164 = pnand %p162, %p163
      %p165 = pneg %p164
      // Predicated region
      $region9: #{tpu_custom_call.1} parent=5 // pred_check
        _
      $region10: #{tpu_custom_call.1} parent=5 // pred_check_branch
        %167 = sbr.rel (%p164) target = $region12
      $region11: #{tpu_custom_call.1} parent=5 // pred_region
        %s168 = ssub.s32 %s18, 1
        // Predicated region
        $region13: #{tpu_custom_call.1} parent=11 // pred_check
          %p169 = pneg %p65
        $region14: #{tpu_custom_call.1} parent=11 // pred_check_branch
          %171 = sbr.rel (%p169) target = $region16
        $region15: #{tpu_custom_call.1} parent=11 // pred_region
          %173 = vsyncadd [#allocation6], 0
          %s174 = sshll.u32 %s1, 4
          %s175 = int_to_ptr.hbm [resolvable:$true] %s174
          %s176 = sshll.u32 [#allocation5], 4
          %s177 = int_to_ptr.vmem [resolvable:$true] %s176
          %182 = dma.hbm_to_vmem [thread:$0]  %s175, 128, %s177, [#allocation6], 64, 64, 4
        $region16: #{tpu_custom_call.1} parent=11 // pred_fallthru
          _
        // Predicated region
        $region17: #{tpu_custom_call.1} parent=11 // pred_check
          %p183 = pneg %p86
        $region18: #{tpu_custom_call.1} parent=11 // pred_check_branch
          %185 = sbr.rel (%p183) target = $region20
        $region19: #{tpu_custom_call.1} parent=11 // pred_region
          _
        $region20: #{tpu_custom_call.1} parent=11 // pred_fallthru
          _
        // Predicated region
        $region21: #{tpu_custom_call.1} parent=11 // pred_check
          %p186 = pneg %p107
        $region22: #{tpu_custom_call.1} parent=11 // pred_check_branch
          %188 = sbr.rel (%p186) target = $region24
        $region23: #{tpu_custom_call.1} parent=11 // pred_region
          %190 = vsyncadd [#allocation6], 0
          %s191 = sshll.u32 %s3, 4
          %s192 = int_to_ptr.hbm [resolvable:$true] %s191
          %s193 = sshll.u32 [#allocation7], 4
          %s194 = int_to_ptr.vmem [resolvable:$true] %s193
          %199 = dma.hbm_to_vmem [thread:$0]  %s192, 1024, %s194, [#allocation6], 64, 64, 4
        $region24: #{tpu_custom_call.1} parent=11 // pred_fallthru
          _
        // Predicated region
        $region25: #{tpu_custom_call.1} parent=11 // pred_check
          %p200 = pneg %p128
        $region26: #{tpu_custom_call.1} parent=11 // pred_check_branch
          %202 = sbr.rel (%p200) target = $region28
        $region27: #{tpu_custom_call.1} parent=11 // pred_region
          _
        $region28: #{tpu_custom_call.1} parent=11 // pred_fallthru
          _
      $region12: #{tpu_custom_call.1} parent=5 // pred_fallthru
        _
      %p203 = scmp.lt.s32.totalorder %s18, 2
      // Predicated region
      $region29: #{tpu_custom_call.1} parent=5 // pred_check
        %p204 = pneg %p203
      $region30: #{tpu_custom_call.1} parent=5 // pred_check_branch
        %206 = sbr.rel (%p204) target = $region32
      $region31: #{tpu_custom_call.1} parent=5 // pred_region
        // Predicated region
        $region33: #{tpu_custom_call.1} parent=31 // pred_check
          %p207 = pneg %p38
        $region34: #{tpu_custom_call.1} parent=31 // pred_check_branch
          %209 = sbr.rel (%p207) target = $region36
        $region35: #{tpu_custom_call.1} parent=31 // pred_region
          %s210 = sand.u32 %s28, 1
          %s211 = scalar_lea.sflag [#allocation3], %s210
          %s212 = sand.u32 %s28, 1
          %s213 = smul.addr %s212, 8
          %s214 = scalar_lea.vmem [#allocation2], %s213
          %216 = vsyncadd %s211, 0
          %s217 = smul.addr %s18, 8
          %s218 = scalar_lea.hbm %s0, %s217
          %s220 = sshll.u32 %s218, 4
          %s221 = int_to_ptr.hbm [resolvable:$true] %s220
          %s222 = sshll.u32 %s214, 4
          %s223 = int_to_ptr.vmem [resolvable:$true] %s222
          %225 = dma.hbm_to_vmem [thread:$0]  %s221, 128, %s223, %s211
        $region36: #{tpu_custom_call.1} parent=31 // pred_fallthru
          _
      $region32: #{tpu_custom_call.1} parent=5 // pred_fallthru
        _
      %p226 = scmp.le.s32.totalorder 1, %s18
      %p227 = scmp.lt.s32.totalorder %s18, 3
      %p228 = pnand %p226, %p227
      %p229 = pneg %p228
      // Predicated region
      $region37: #{tpu_custom_call.1} parent=5 // pred_check
        _
      $region38: #{tpu_custom_call.1} parent=5 // pred_check_branch
        %231 = sbr.rel (%p228) target = $region40
      $region39: #{tpu_custom_call.1} parent=5 // pred_region
        %s232 = ssub.s32 %s18, 1
        %s233 = sand.u32 %s31, 1
        %s234 = scalar_lea.sflag [#allocation3], %s233
        %s235 = sand.u32 %s31, 1
        %s236 = smul.addr %s235, 8
        %s237 = scalar_lea.vmem [#allocation2], %s236
        // Predicated region
        $region41: #{tpu_custom_call.1} parent=39 // pred_check
          %p238 = pneg %p44
        $region42: #{tpu_custom_call.1} parent=39 // pred_check_branch
          %240 = sbr.rel (%p238) target = $region44
        $region43: #{tpu_custom_call.1} parent=39 // pred_region
          %242 = dma.done %s234, 128
        $region44: #{tpu_custom_call.1} parent=39 // pred_fallthru
          _
        // Predicated region
        $region45: #{tpu_custom_call.1} parent=39 // pred_check
          %p243 = pneg %p65
        $region46: #{tpu_custom_call.1} parent=39 // pred_check_branch
          %245 = sbr.rel (%p243) target = $region48
        $region47: #{tpu_custom_call.1} parent=39 // pred_region
          %247 = dma.done [#allocation6], 128
        $region48: #{tpu_custom_call.1} parent=39 // pred_fallthru
          _
        // Predicated region
        $region49: #{tpu_custom_call.1} parent=39 // pred_check
          %p248 = pneg %p107
        $region50: #{tpu_custom_call.1} parent=39 // pred_check_branch
          %250 = sbr.rel (%p248) target = $region52
        $region51: #{tpu_custom_call.1} parent=39 // pred_region
          %252 = dma.done [#allocation6], 1024
        $region52: #{tpu_custom_call.1} parent=39 // pred_fallthru
          _
        %s253 = sand.u32 %s31, 1
        %s254 = scalar_lea.sflag [#allocation3], %s253
        %s255 = sand.u32 %s31, 1
        %s256 = smul.addr %s255, 8
        %s257 = scalar_lea.vmem [#allocation2], %s256
        %p258 = pneg %p44
        %p259 = pneg %p41
        %p260 = pneg %p65
        %p261 = pneg %p62
        %p262 = pneg %p86
        %p263 = pneg %p83
        %p264 = pneg %p107
        %p265 = pneg %p104
        %p266 = pneg %p128
        %p267 = pneg %p125
        %p268 = pneg %p154
        %p269 = pneg %p151
        %s270 = sand.u32 %s141, 1
        %s271 = scalar_lea.sflag [#allocation4], %s270
        %s272 = sand.u32 %s141, 1
        %s273 = smul.addr %s272, 8
        %s274 = scalar_lea.vmem [#allocation8], %s273
        %v276 = vld [vmem:[%s237] sm:$0xff]
        %v277 = vpack.c.bf16 %v276, %v276
        %v278 = vld [vmem:[#allocation5] sm:$0xf]
        %v279 = vld [vmem:[#allocation5 + $0x4] sm:$0xf]
        %v280 = vld [vmem:[%s2] sm:$0x1]
        %v282 = vperm.slane %v280, 0
        %v286 = vunpack.c.l.b16 %v278
        %v287 = vunpack.c.l.b16 %v279
        %v288 = vpack.c.b16 %v287, %v286
        %vm290 = vcmask 130048
        %v292 = vsel %vm290, %v277, 0
        %294 = vmatpush.bf16.msra.mxu0 0
        %295 = vmatpush.bf16.msra.mxu0 0
        %296 = vmatpush.bf16.msra.mxu0 0
        %297 = vmatpush.bf16.msra.mxu0 0
        %298 = vmatpush.bf16.msra.mxu0 0
        %299 = vmatpush.bf16.msra.mxu0 0
        %300 = vmatpush.bf16.msra.mxu0 0
        %301 = vmatpush.bf16.msra.mxu0 %v288
        %302 = vmatmul.bf16.gmra.mxu0 %v292
        %v303 = vpop.f32.mrf.mxu0
        %v304 = vadd.f32 %v282, %v303
        %v305 = vpop.f32.mrf.mxu0
        %306 = vdwg.mxu0
        %v307 = vmax.f32 %v304, 0.0
        %v308 = vpack.c.bf16 %v307, %v307
        %v309 = vld [vmem:[#allocation7] sm:$0xf]
        %v310 = vld [vmem:[#allocation7 + $0x4] sm:$0xf]
        %v311 = vld [vmem:[#allocation7 + $0x8] sm:$0xf]
        %v312 = vld [vmem:[#allocation7 + $0xc] sm:$0xf]
        %v313 = vld [vmem:[#allocation7 + $0x10] sm:$0xf]
        %v314 = vld [vmem:[#allocation7 + $0x14] sm:$0xf]
        %v315 = vld [vmem:[#allocation7 + $0x18] sm:$0xf]
        %v316 = vld [vmem:[#allocation7 + $0x1c] sm:$0xf]
        %v317 = vld [vmem:[#allocation7 + $0x20] sm:$0xf]
        %v318 = vld [vmem:[#allocation7 + $0x24] sm:$0xf]
        %v319 = vld [vmem:[#allocation7 + $0x28] sm:$0xf]
        %v320 = vld [vmem:[#allocation7 + $0x2c] sm:$0xf]
        %v321 = vld [vmem:[#allocation7 + $0x30] sm:$0xf]
        %v322 = vld [vmem:[#allocation7 + $0x34] sm:$0xf]
        %v323 = vld [vmem:[#allocation7 + $0x38] sm:$0xf]
        %v324 = vld [vmem:[#allocation7 + $0x3c] sm:$0xf]
        %v325 = vld [vmem:[%s4] sm:$0x1]
        %v327 = vperm.slane %v325, 0
        %v345 = vunpack.c.l.b16 %v309
        %v346 = vunpack.c.l.b16 %v310
        %v347 = vunpack.c.l.b16 %v311
        %v348 = vunpack.c.l.b16 %v312
        %v349 = vunpack.c.l.b16 %v313
        %v350 = vunpack.c.l.b16 %v314
        %v351 = vunpack.c.l.b16 %v315
        %v352 = vunpack.c.l.b16 %v316
        %v353 = vunpack.c.l.b16 %v317
        %v354 = vunpack.c.l.b16 %v318
        %v355 = vunpack.c.l.b16 %v319
        %v356 = vunpack.c.l.b16 %v320
        %v357 = vunpack.c.l.b16 %v321
        %v358 = vunpack.c.l.b16 %v322
        %v359 = vunpack.c.l.b16 %v323
        %v360 = vunpack.c.l.b16 %v324
        %v361 = vpack.c.b16 %v346, %v345
        %v362 = vpack.c.b16 %v348, %v347
        %v363 = vpack.c.b16 %v350, %v349
        %v364 = vpack.c.b16 %v352, %v351
        %v365 = vpack.c.b16 %v354, %v353
        %v366 = vpack.c.b16 %v356, %v355
        %v367 = vpack.c.b16 %v358, %v357
        %v368 = vpack.c.b16 %v360, %v359
        %377 = vmatpush.bf16.msra.mxu0 %v368
        %378 = vmatpush.bf16.msra.mxu0 %v367
        %379 = vmatpush.bf16.msra.mxu0 %v366
        %380 = vmatpush.bf16.msra.mxu0 %v365
        %381 = vmatpush.bf16.msra.mxu0 %v364
        %382 = vmatpush.bf16.msra.mxu0 %v363
        %383 = vmatpush.bf16.msra.mxu0 %v362
        %384 = vmatpush.bf16.msra.mxu0 %v361
        %385 = vmatmul.bf16.gmra.mxu0 %v308
        %v386 = vpop.f32.mrf.mxu0
        %v387 = vadd.f32 %v327, %v386
        %v388 = vpop.f32.mrf.mxu0
        %389 = vdwg.mxu0
        %390 = vmax.xlane.f32.xlu0 %v387
        %v391 = vpop.xlane.xlu0 %390
        %v392 = vsub.f32 %v387, %v391
        %v393 = vmul.f32 %v392, 1.442695
        %v394 = vpow.pop %v393
        %395 = vadd.xlane.f32.xlu0 %v394
        %v396 = vpop.xlane.xlu0 %395
        %v397 = vlog2.pop %v396
        %v398 = vmul.f32 %v397, 0.6931472
        %v399 = vsub.f32 %v392, %v398
        %400 = vst [vmem:[%s274] sm:$0xff] %v399
        %s401 = sand.u32 %s141, 1
        %s402 = scalar_lea.sflag [#allocation4], %s401
        %s403 = sand.u32 %s141, 1
        %s404 = smul.addr %s403, 8
        %s405 = scalar_lea.vmem [#allocation8], %s404
        // Predicated region
        $region53: #{tpu_custom_call.1} parent=39 // pred_check
          %p406 = pneg %p151
        $region54: #{tpu_custom_call.1} parent=39 // pred_check_branch
          %408 = sbr.rel (%p406) target = $region56
        $region55: #{tpu_custom_call.1} parent=39 // pred_region
          %410 = vsyncadd %s402, 0
          %s411 = smul.addr %s23, 8
          %s412 = scalar_lea.hbm %s5, %s411
          %s414 = sshll.u32 %s405, 4
          %s415 = int_to_ptr.vmem [resolvable:$true] %s414
          %s416 = sshll.u32 %s412, 4
          %s417 = int_to_ptr.hbm [resolvable:$true] %s416
          %419 = dma.vmem_to_hbm [thread:$0]  %s415, 128, %s417, %s402
        $region56: #{tpu_custom_call.1} parent=39 // pred_fallthru
          _
      $region40: #{tpu_custom_call.1} parent=5 // pred_fallthru
        _
      %p420 = scmp.le.s32.totalorder 2, %s18
      // Predicated region
      $region57: #{tpu_custom_call.1} parent=5 // pred_check
        %p421 = pneg %p420
      $region58: #{tpu_custom_call.1} parent=5 // pred_check_branch
        %423 = sbr.rel (%p421) target = $region60
      $region59: #{tpu_custom_call.1} parent=5 // pred_region
        %s424 = ssub.s32 %s18, 2
        // Predicated region
        $region61: #{tpu_custom_call.1} parent=59 // pred_check
          %p425 = pneg %p157
        $region62: #{tpu_custom_call.1} parent=59 // pred_check_branch
          %427 = sbr.rel (%p425) target = $region64
        $region63: #{tpu_custom_call.1} parent=59 // pred_region
          %s428 = sand.u32 %s142, 1
          %s429 = scalar_lea.sflag [#allocation4], %s428
          %s430 = sand.u32 %s142, 1
          %s431 = smul.addr %s430, 8
          %s432 = scalar_lea.vmem [#allocation8], %s431
          %434 = dma.done %s429, 128
        $region64: #{tpu_custom_call.1} parent=59 // pred_fallthru
          _
      $region60: #{tpu_custom_call.1} parent=5 // pred_fallthru
        _
    $region6: #{tpu_custom_call.1} parent=1 // loop_footer
      %s22 = sadd.s32 1, %s18
    $region7: #{tpu_custom_call.1} parent=1 // loop_footer_branch
      %17 = sbr.rel target = $region3
    $region8: #{tpu_custom_call.1} parent=1 // loop_exit
      _
    %435 = vsyncpa [#allocation3], 1
    %s436 = scalar_lea.sflag [#allocation3], 1
    %437 = vsyncpa %s436, 1
    %438 = vsyncpa [#allocation6], 1
    %439 = vsyncpa [#allocation4], 1
    %s440 = scalar_lea.sflag [#allocation4], 1
    %441 = vsyncpa %s440, 1

// kernel: tpu_custom_call.1
$region0: #{tpu_custom_call.1}
  #allocation0 [shape = 'u32[]', space=smem, size = 0x4, offset = 0x4, fixed_abs, tag = 'smem constant byte address 0x4 - core index']
  #allocation1 [shape = 'u32[72,128]{1,0:T(1,128)}', space=vmem, size = 0x9000, scoped, tag = 'internal scratch']
  %s0 = inlined_call_operand.hbm [shape: f32[16,16], index: 0, kind: input, shape index: {}]
  %s1 = inlined_call_operand.hbm [shape: bf16[16,128], index: 1, kind: input, shape index: {}]
  %s2 = inlined_call_operand.vmem [shape: f32[1,128], index: 2, kind: input, shape index: {}]
  %s3 = inlined_call_operand.hbm [shape: bf16[128,128], index: 3, kind: input, shape index: {}]
  %s4 = inlined_call_operand.vmem [shape: f32[1,128], index: 4, kind: input, shape index: {}]
  %s5 = inlined_call_operand.hbm [shape: f32[16,128], index: 5, kind: output, shape index: {}]
  %s6 = sld [smem:[#allocation0]]
  $region65: #{tpu_custom_call.1} parent=0
    _
  %s8 = ssub.s32 1, %s6
  %s9 = scalar_select 0, %s8, %s6
  $region1: #{tpu_custom_call.1} parent=0
    #allocation2 [shape = 'u8[8192]{0}', space=vmem, size = 0x2000, scoped, tag = 'input window, operand 0']
    #allocation3 [shape = 's32[2]{0}', space=sflag, size = 0x8, scoped, tag = 'scoped memory for tpu_custom_call.1']
    #allocation4 [shape = 's32[2]{0}', space=sflag, size = 0x8, scoped, tag = 'scoped memory for tpu_custom_call.1']
    #allocation5 [shape = 'u8[4096]{0}', space=vmem, size = 0x1000, scoped, tag = 'input window, operand 1, single buffered']
    #allocation6 [shape = 's32[1]{0}', space=sflag, size = 0x4, scoped, tag = 'scoped memory for tpu_custom_call.1']
    #allocation7 [shape = 'u8[32768]{0}', space=vmem, size = 0x8000, scoped, tag = 'input window, operand 3, single buffered']
    #allocation8 [shape = 'u8[8192]{0}', space=vmem, size = 0x2000, scoped, tag = 'output window, operand 0']
    %10 = vsyncpa [#allocation3], 0
    %s11 = scalar_lea.sflag [#allocation3], 1
    %12 = vsyncpa %s11, 0
    %13 = vsyncpa [#allocation6], 0
    %14 = vsyncpa [#allocation4], 0
    %s15 = scalar_lea.sflag [#allocation4], 1
    %16 = vsyncpa %s15, 0
    loop: start=0, step=1, limit=4
    $region2: #{tpu_custom_call.1} parent=1 // loop_pre_header
      _
    $region3: #{tpu_custom_call.1} parent=1 // loop_header
      %s18 = sphi 0, %s22
      %p19 = scmp.ge.s32.totalorder %s18, 4
      %s28 = sphi 0, %s30
      %s31 = sphi 0, %s28
      %s32 = sphi 0, %s31
      %s48 = sphi 0, %s32
      %s52 = sphi 0, %s52
      %s54 = sphi 0, %s52
      %s55 = sphi 0, %s54
      %s69 = sphi 0, %s55
      %s73 = sphi 0, %s73
      %s75 = sphi 0, %s73
      %s76 = sphi 0, %s75
      %s90 = sphi 0, %s76
      %s94 = sphi 0, %s94
      %s96 = sphi 0, %s94
      %s97 = sphi 0, %s96
      %s111 = sphi 0, %s97
      %s115 = sphi 0, %s115
      %s117 = sphi 0, %s115
      %s118 = sphi 0, %s117
      %s132 = sphi 0, %s118
      %s138 = sphi 0, %s140
      %s141 = sphi 0, %s138
      %s142 = sphi 0, %s141
      %s158 = sphi 0, %s142
    $region4: #{tpu_custom_call.1} parent=1 // loop_header_branch
      %21 = sbr.rel (%p19) target = $region8
    $region5: #{tpu_custom_call.1} parent=1 // loop_body
      %s23 = ssub.s32 %s18, 1
      %s24 = ssub.s32 %s18, 2
      %s25 = sadd.s32 %s18, 1
      %s26 = ssub.s32 %s18, %s25
      %p27 = scmp.eq.s32.totalorder %s26, 0
      %s29 = sadd.s32 %s28, 1
      %s30 = scalar_select %p27, %s28, %s29
      %p33 = pneg %p27
      %p34 = scmp.eq.s32.totalorder %s18, 1
      %p35 = por %p33, %p34
      %p36 = scmp.ne.s32.totalorder %s28, %s31
      %p37 = scmp.eq.s32.totalorder %s18, 0
      %p38 = por %p36, %p37
      %p39 = scmp.ne.s32.totalorder %s28, %s31
      %p40 = scmp.eq.s32.totalorder %s23, 1
      %p41 = por %p39, %p40
      %p42 = scmp.ne.s32.totalorder %s31, %s32
      %p43 = scmp.eq.s32.totalorder %s23, 0
      %p44 = por %p42, %p43
      %p45 = scmp.ne.s32.totalorder %s31, %s32
      %p46 = scmp.eq.s32.totalorder %s24, 1
      %p47 = por %p45, %p46
      %p49 = scmp.ne.s32.totalorder %s32, %s48
      %p50 = scmp.eq.s32.totalorder %s24, 0
      %p51 = por %p49, %p50
      %s53 = sadd.s32 %s52, 1
      %p56 = scmp.eq.s32.totalorder %s18, 1
      %p57 = scmp.ne.s32.totalorder %s52, %s54
      %p58 = scmp.eq.s32.totalorder %s18, 0
      %p59 = por %p57, %p58
      %p60 = scmp.ne.s32.totalorder %s52, %s54
      %p61 = scmp.eq.s32.totalorder %s23, 1
      %p62 = por %p60, %p61
      %p63 = scmp.ne.s32.totalorder %s54, %s55
      %p64 = scmp.eq.s32.totalorder %s23, 0
      %p65 = por %p63, %p64
      %p66 = scmp.ne.s32.totalorder %s54, %s55
      %p67 = scmp.eq.s32.totalorder %s24, 1
      %p68 = por %p66, %p67
      %p70 = scmp.ne.s32.totalorder %s55, %s69
      %p71 = scmp.eq.s32.totalorder %s24, 0
      %p72 = por %p70, %p71
      %s74 = sadd.s32 %s73, 1
      %p77 = scmp.eq.s32.totalorder %s18, 1
      %p78 = scmp.ne.s32.totalorder %s73, %s75
      %p79 = scmp.eq.s32.totalorder %s18, 0
      %p80 = por %p78, %p79
      %p81 = scmp.ne.s32.totalorder %s73, %s75
      %p82 = scmp.eq.s32.totalorder %s23, 1
      %p83 = por %p81, %p82
      %p84 = scmp.ne.s32.totalorder %s75, %s76
      %p85 = scmp.eq.s32.totalorder %s23, 0
      %p86 = por %p84, %p85
      %p87 = scmp.ne.s32.totalorder %s75, %s76
      %p88 = scmp.eq.s32.totalorder %s24, 1
      %p89 = por %p87, %p88
      %p91 = scmp.ne.s32.totalorder %s76, %s90
      %p92 = scmp.eq.s32.totalorder %s24, 0
      %p93 = por %p91, %p92
      %s95 = sadd.s32 %s94, 1
      %p98 = scmp.eq.s32.totalorder %s18, 1
      %p99 = scmp.ne.s32.totalorder %s94, %s96
      %p100 = scmp.eq.s32.totalorder %s18, 0
      %p101 = por %p99, %p100
      %p102 = scmp.ne.s32.totalorder %s94, %s96
      %p103 = scmp.eq.s32.totalorder %s23, 1
      %p104 = por %p102, %p103
      %p105 = scmp.ne.s32.totalorder %s96, %s97
      %p106 = scmp.eq.s32.totalorder %s23, 0
      %p107 = por %p105, %p106
      %p108 = scmp.ne.s32.totalorder %s96, %s97
      %p109 = scmp.eq.s32.totalorder %s24, 1
      %p110 = por %p108, %p109
      %p112 = scmp.ne.s32.totalorder %s97, %s111
      %p113 = scmp.eq.s32.totalorder %s24, 0
      %p114 = por %p112, %p113
      %s116 = sadd.s32 %s115, 1
      %p119 = scmp.eq.s32.totalorder %s18, 1
      %p120 = scmp.ne.s32.totalorder %s115, %s117
      %p121 = scmp.eq.s32.totalorder %s18, 0
      %p122 = por %p120, %p121
      %p123 = scmp.ne.s32.totalorder %s115, %s117
      %p124 = scmp.eq.s32.totalorder %s23, 1
      %p125 = por %p123, %p124
      %p126 = scmp.ne.s32.totalorder %s117, %s118
      %p127 = scmp.eq.s32.totalorder %s23, 0
      %p128 = por %p126, %p127
      %p129 = scmp.ne.s32.totalorder %s117, %s118
      %p130 = scmp.eq.s32.totalorder %s24, 1
      %p131 = por %p129, %p130
      %p133 = scmp.ne.s32.totalorder %s118, %s132
      %p134 = scmp.eq.s32.totalorder %s24, 0
      %p135 = por %p133, %p134
      %s136 = ssub.s32 %s18, %s25
      %p137 = scmp.eq.s32.totalorder %s136, 0
      %s139 = sadd.s32 %s138, 1
      %s140 = scalar_select %p137, %s138, %s139
      %p143 = pneg %p137
      %p144 = scmp.eq.s32.totalorder %s18, 1
      %p145 = por %p143, %p144
      %p146 = scmp.ne.s32.totalorder %s138, %s141
      %p147 = scmp.eq.s32.totalorder %s18, 0
      %p148 = por %p146, %p147
      %p149 = scmp.ne.s32.totalorder %s138, %s141
      %p150 = scmp.eq.s32.totalorder %s23, 1
      %p151 = por %p149, %p150
      %p152 = scmp.ne.s32.totalorder %s141, %s142
      %p153 = scmp.eq.s32.totalorder %s23, 0
      %p154 = por %p152, %p153
      %p155 = scmp.ne.s32.totalorder %s141, %s142
      %p156 = scmp.eq.s32.totalorder %s24, 1
      %p157 = por %p155, %p156
      %p159 = scmp.ne.s32.totalorder %s142, %s158
      %p160 = scmp.eq.s32.totalorder %s24, 0
      %p161 = por %p159, %p160
      %p162 = scmp.le.s32.totalorder 1, %s18
      %p163 = scmp.lt.s32.totalorder %s18, 3
      %p164 = pnand %p162, %p163
      %p165 = pneg %p164
      // Predicated region
      $region9: #{tpu_custom_call.1} parent=5 // pred_check
        _
      $region10: #{tpu_custom_call.1} parent=5 // pred_check_branch
        %167 = sbr.rel (%p164) target = $region12
      $region11: #{tpu_custom_call.1} parent=5 // pred_region
        %s168 = ssub.s32 %s18, 1
        // Predicated region
        $region13: #{tpu_custom_call.1} parent=11 // pred_check
          %p169 = pneg %p65
        $region14: #{tpu_custom_call.1} parent=11 // pred_check_branch
          %171 = sbr.rel (%p169) target = $region16
        $region15: #{tpu_custom_call.1} parent=11 // pred_region
          %173 = vsyncadd [#allocation6], 0
          %s174 = sshll.u32 %s1, 4
          %s175 = int_to_ptr.hbm [resolvable:$true] %s174
          %s176 = sshll.u32 [#allocation5], 4
          %s177 = int_to_ptr.vmem [resolvable:$true] %s176
          %182 = dma.hbm_to_vmem [thread:$0]  %s175, 128, %s177, [#allocation6], 64, 64, 4
        $region16: #{tpu_custom_call.1} parent=11 // pred_fallthru
          _
        // Predicated region
        $region17: #{tpu_custom_call.1} parent=11 // pred_check
          %p183 = pneg %p86
        $region18: #{tpu_custom_call.1} parent=11 // pred_check_branch
          %185 = sbr.rel (%p183) target = $region20
        $region19: #{tpu_custom_call.1} parent=11 // pred_region
          _
        $region20: #{tpu_custom_call.1} parent=11 // pred_fallthru
          _
        // Predicated region
        $region21: #{tpu_custom_call.1} parent=11 // pred_check
          %p186 = pneg %p107
        $region22: #{tpu_custom_call.1} parent=11 // pred_check_branch
          %188 = sbr.rel (%p186) target = $region24
        $region23: #{tpu_custom_call.1} parent=11 // pred_region
          %190 = vsyncadd [#allocation6], 0
          %s191 = sshll.u32 %s3, 4
          %s192 = int_to_ptr.hbm [resolvable:$true] %s191
          %s193 = sshll.u32 [#allocation7], 4
          %s194 = int_to_ptr.vmem [resolvable:$true] %s193
          %199 = dma.hbm_to_vmem [thread:$0]  %s192, 1024, %s194, [#allocation6], 64, 64, 4
        $region24: #{tpu_custom_call.1} parent=11 // pred_fallthru
          _
        // Predicated region
        $region25: #{tpu_custom_call.1} parent=11 // pred_check
          %p200 = pneg %p128
        $region26: #{tpu_custom_call.1} parent=11 // pred_check_branch
          %202 = sbr.rel (%p200) target = $region28
        $region27: #{tpu_custom_call.1} parent=11 // pred_region
          _
        $region28: #{tpu_custom_call.1} parent=11 // pred_fallthru
          _
      $region12: #{tpu_custom_call.1} parent=5 // pred_fallthru
        _
      %p203 = scmp.lt.s32.totalorder %s18, 2
      // Predicated region
      $region29: #{tpu_custom_call.1} parent=5 // pred_check
        %p204 = pneg %p203
      $region30: #{tpu_custom_call.1} parent=5 // pred_check_branch
        %206 = sbr.rel (%p204) target = $region32
      $region31: #{tpu_custom_call.1} parent=5 // pred_region
        // Predicated region
        $region33: #{tpu_custom_call.1} parent=31 // pred_check
          %p207 = pneg %p38
        $region34: #{tpu_custom_call.1} parent=31 // pred_check_branch
          %209 = sbr.rel (%p207) target = $region36
        $region35: #{tpu_custom_call.1} parent=31 // pred_region
          %s210 = sand.u32 %s28, 1
          %s211 = scalar_lea.sflag [#allocation3], %s210
          %s212 = sand.u32 %s28, 1
          %s213 = smul.addr %s212, 8
          %s214 = scalar_lea.vmem [#allocation2], %s213
          %216 = vsyncadd %s211, 0
          %s217 = smul.addr %s18, 8
          %s218 = scalar_lea.hbm %s0, %s217
          %s220 = sshll.u32 %s218, 4
          %s221 = int_to_ptr.hbm [resolvable:$true] %s220
          %s222 = sshll.u32 %s214, 4
          %s223 = int_to_ptr.vmem [resolvable:$true] %s222
          %225 = dma.hbm_to_vmem [thread:$0]  %s221, 128, %s223, %s211
        $region36: #{tpu_custom_call.1} parent=31 // pred_fallthru
          _
      $region32: #{tpu_custom_call.1} parent=5 // pred_fallthru
        _
      %p226 = scmp.le.s32.totalorder 1, %s18
      %p227 = scmp.lt.s32.totalorder %s18, 3
      %p228 = pnand %p226, %p227
      %p229 = pneg %p228
      // Predicated region
      $region37: #{tpu_custom_call.1} parent=5 // pred_check
        _
      $region38: #{tpu_custom_call.1} parent=5 // pred_check_branch
        %231 = sbr.rel (%p228) target = $region40
      $region39: #{tpu_custom_call.1} parent=5 // pred_region
        %s232 = ssub.s32 %s18, 1
        %s233 = sand.u32 %s31, 1
        %s234 = scalar_lea.sflag [#allocation3], %s233
        %s235 = sand.u32 %s31, 1
        %s236 = smul.addr %s235, 8
        %s237 = scalar_lea.vmem [#allocation2], %s236
        // Predicated region
        $region41: #{tpu_custom_call.1} parent=39 // pred_check
          %p238 = pneg %p44
        $region42: #{tpu_custom_call.1} parent=39 // pred_check_branch
          %240 = sbr.rel (%p238) target = $region44
        $region43: #{tpu_custom_call.1} parent=39 // pred_region
          %242 = dma.done %s234, 128
        $region44: #{tpu_custom_call.1} parent=39 // pred_fallthru
          _
        // Predicated region
        $region45: #{tpu_custom_call.1} parent=39 // pred_check
          %p243 = pneg %p65
        $region46: #{tpu_custom_call.1} parent=39 // pred_check_branch
          %245 = sbr.rel (%p243) target = $region48
        $region47: #{tpu_custom_call.1} parent=39 // pred_region
          %247 = dma.done [#allocation6], 128
        $region48: #{tpu_custom_call.1} parent=39 // pred_fallthru
          _
        // Predicated region
        $region49: #{tpu_custom_call.1} parent=39 // pred_check
          %p248 = pneg %p107
        $region50: #{tpu_custom_call.1} parent=39 // pred_check_branch
          %250 = sbr.rel (%p248) target = $region52
        $region51: #{tpu_custom_call.1} parent=39 // pred_region
          %252 = dma.done [#allocation6], 1024
        $region52: #{tpu_custom_call.1} parent=39 // pred_fallthru
          _
        %s253 = sand.u32 %s31, 1
        %s254 = scalar_lea.sflag [#allocation3], %s253
        %s255 = sand.u32 %s31, 1
        %s256 = smul.addr %s255, 8
        %s257 = scalar_lea.vmem [#allocation2], %s256
        %p258 = pneg %p44
        %p259 = pneg %p41
        %p260 = pneg %p65
        %p261 = pneg %p62
        %p262 = pneg %p86
        %p263 = pneg %p83
        %p264 = pneg %p107
        %p265 = pneg %p104
        %p266 = pneg %p128
        %p267 = pneg %p125
        %p268 = pneg %p154
        %p269 = pneg %p151
        %s270 = sand.u32 %s141, 1
        %s271 = scalar_lea.sflag [#allocation4], %s270
        %s272 = sand.u32 %s141, 1
        %s273 = smul.addr %s272, 8
        %s274 = scalar_lea.vmem [#allocation8], %s273
        %v276 = vld [vmem:[%s237] sm:$0xff]
        %v277 = vpack.c.bf16 %v276, %v276
        %v278 = vld [vmem:[#allocation5] sm:$0xf]
        %v279 = vld [vmem:[#allocation5 + $0x4] sm:$0xf]
        %v280 = vld [vmem:[%s2] sm:$0x1]
        %v282 = vperm.slane %v280, 0
        %v286 = vunpack.c.l.b16 %v278
        %v287 = vunpack.c.l.b16 %v279
        %v288 = vpack.c.b16 %v287, %v286
        %vm290 = vcmask 130048
        %v292 = vsel %vm290, %v277, 0
        %294 = vmatpush.bf16.msra.mxu0 0
        %295 = vmatpush.bf16.msra.mxu0 0
        %296 = vmatpush.bf16.msra.mxu0 0
        %297 = vmatpush.bf16.msra.mxu0 0
        %298 = vmatpush.bf16.msra.mxu0 0
        %299 = vmatpush.bf16.msra.mxu0 0
        %300 = vmatpush.bf16.msra.mxu0 0
        %301 = vmatpush.bf16.msra.mxu0 %v288
        %302 = vmatmul.bf16.gmra.mxu0 %v292
        %v303 = vpop.f32.mrf.mxu0
        %v304 = vadd.f32 %v282, %v303
        %v305 = vpop.f32.mrf.mxu0
        %306 = vdwg.mxu0
        %v307 = vmax.f32 %v304, 0.0
        %v308 = vpack.c.bf16 %v307, %v307
        %v309 = vld [vmem:[#allocation7] sm:$0xf]
        %v310 = vld [vmem:[#allocation7 + $0x4] sm:$0xf]
        %v311 = vld [vmem:[#allocation7 + $0x8] sm:$0xf]
        %v312 = vld [vmem:[#allocation7 + $0xc] sm:$0xf]
        %v313 = vld [vmem:[#allocation7 + $0x10] sm:$0xf]
        %v314 = vld [vmem:[#allocation7 + $0x14] sm:$0xf]
        %v315 = vld [vmem:[#allocation7 + $0x18] sm:$0xf]
        %v316 = vld [vmem:[#allocation7 + $0x1c] sm:$0xf]
        %v317 = vld [vmem:[#allocation7 + $0x20] sm:$0xf]
        %v318 = vld [vmem:[#allocation7 + $0x24] sm:$0xf]
        %v319 = vld [vmem:[#allocation7 + $0x28] sm:$0xf]
        %v320 = vld [vmem:[#allocation7 + $0x2c] sm:$0xf]
        %v321 = vld [vmem:[#allocation7 + $0x30] sm:$0xf]
        %v322 = vld [vmem:[#allocation7 + $0x34] sm:$0xf]
        %v323 = vld [vmem:[#allocation7 + $0x38] sm:$0xf]
        %v324 = vld [vmem:[#allocation7 + $0x3c] sm:$0xf]
        %v325 = vld [vmem:[%s4] sm:$0x1]
        %v327 = vperm.slane %v325, 0
        %v345 = vunpack.c.l.b16 %v309
        %v346 = vunpack.c.l.b16 %v310
        %v347 = vunpack.c.l.b16 %v311
        %v348 = vunpack.c.l.b16 %v312
        %v349 = vunpack.c.l.b16 %v313
        %v350 = vunpack.c.l.b16 %v314
        %v351 = vunpack.c.l.b16 %v315
        %v352 = vunpack.c.l.b16 %v316
        %v353 = vunpack.c.l.b16 %v317
        %v354 = vunpack.c.l.b16 %v318
        %v355 = vunpack.c.l.b16 %v319
        %v356 = vunpack.c.l.b16 %v320
        %v357 = vunpack.c.l.b16 %v321
        %v358 = vunpack.c.l.b16 %v322
        %v359 = vunpack.c.l.b16 %v323
        %v360 = vunpack.c.l.b16 %v324
        %v361 = vpack.c.b16 %v346, %v345
        %v362 = vpack.c.b16 %v348, %v347
        %v363 = vpack.c.b16 %v350, %v349
        %v364 = vpack.c.b16 %v352, %v351
        %v365 = vpack.c.b16 %v354, %v353
        %v366 = vpack.c.b16 %v356, %v355
        %v367 = vpack.c.b16 %v358, %v357
        %v368 = vpack.c.b16 %v360, %v359
        %377 = vmatpush.bf16.msra.mxu0 %v368
        %378 = vmatpush.bf16.msra.mxu0 %v367
        %379 = vmatpush.bf16.msra.mxu0 %v366
        %380 = vmatpush.bf16.msra.mxu0 %v365
        %381 = vmatpush.bf16.msra.mxu0 %v364
        %382 = vmatpush.bf16.msra.mxu0 %v363
        %383 = vmatpush.bf16.msra.mxu0 %v362
        %384 = vmatpush.bf16.msra.mxu0 %v361
        %385 = vmatmul.bf16.gmra.mxu0 %v308
        %v386 = vpop.f32.mrf.mxu0
        %v387 = vadd.f32 %v327, %v386
        %v388 = vpop.f32.mrf.mxu0
        %389 = vdwg.mxu0
        %390 = vmax.xlane.f32.xlu0 %v387
        %v391 = vpop.xlane.xlu0 %390
        %v392 = vsub.f32 %v387, %v391
        %v393 = vmul.f32 %v392, 1.442695
        %v394 = vpow.pop %v393
        %395 = vadd.xlane.f32.xlu0 %v394
        %v396 = vpop.xlane.xlu0 %395
        %v397 = vlog2.pop %v396
        %v398 = vmul.f32 %v397, 0.6931472
        %v399 = vsub.f32 %v392, %v398
        %400 = vst [vmem:[%s274] sm:$0xff] %v399
        %s401 = sand.u32 %s141, 1
        %s402 = scalar_lea.sflag [#allocation4], %s401
        %s403 = sand.u32 %s141, 1
        %s404 = smul.addr %s403, 8
        %s405 = scalar_lea.vmem [#allocation8], %s404
        // Predicated region
        $region53: #{tpu_custom_call.1} parent=39 // pred_check
          %p406 = pneg %p151
        $region54: #{tpu_custom_call.1} parent=39 // pred_check_branch
          %408 = sbr.rel (%p406) target = $region56
        $region55: #{tpu_custom_call.1} parent=39 // pred_region
          %410 = vsyncadd %s402, 0
          %s411 = smul.addr %s23, 8
          %s412 = scalar_lea.hbm %s5, %s411
          %s414 = sshll.u32 %s405, 4
          %s415 = int_to_ptr.vmem [resolvable:$true] %s414
          %s416 = sshll.u32 %s412, 4
          %s417 = int_to_ptr.hbm [resolvable:$true] %s416
          %419 = dma.vmem_to_hbm [thread:$0]  %s415, 128, %s417, %s402
        $region56: #{tpu_custom_call.1} parent=39 // pred_fallthru
          _
      $region40: #{tpu_custom_call.1} parent=5 // pred_fallthru
        _
      %p420 = scmp.le.s32.totalorder 2, %s18
      // Predicated region
      $region57: #{tpu_custom_call.1} parent=5 // pred_check
        %p421 = pneg %p420
      $region58: #{tpu_custom_call.1} parent=5 // pred_check_branch
        %423 = sbr.rel (%p421) target = $region60
      $region59: #{tpu_custom_call.1} parent=5 // pred_region
        %s424 = ssub.s32 %s18, 2
        // Predicated region
        $region61: #{tpu_custom_call.1} parent=59 // pred_check
          %p425 = pneg %p157
        $region62: #{tpu_custom_call.1} parent=59 // pred_check_branch
          %427 = sbr.rel (%p425) target = $region64
        $region63: #{tpu_custom_call.1} parent=59 // pred_region
          %s428 = sand.u32 %s142, 1
          %s429 = scalar_lea.sflag [#allocation4], %s428
          %s430 = sand.u32 %s142, 1
          %s431 = smul.addr %s430, 8
          %s432 = scalar_lea.vmem [#allocation8], %s431
          %434 = dma.done %s429, 128
        $region64: #{tpu_custom_call.1} parent=59 // pred_fallthru
          _
      $region60: #{tpu_custom_call.1} parent=5 // pred_fallthru
        _
    $region6: #{tpu_custom_call.1} parent=1 // loop_footer
      %s22 = sadd.s32 1, %s18
    $region7: #{tpu_custom_call.1} parent=1 // loop_footer_branch
      %17 = sbr.rel target = $region3
    $region8: #{tpu_custom_call.1} parent=1 // loop_exit
      _
    %435 = vsyncpa [#allocation3], 1
    %s436 = scalar_lea.sflag [#allocation3], 1
    %437 = vsyncpa %s436, 1
    %438 = vsyncpa [#allocation6], 1
    %439 = vsyncpa [#allocation4], 1
    %s440 = scalar_lea.sflag [#allocation4], 1
    %441 = vsyncpa %s440, 1

</llo_original>
